<compile_context>
chip_gen: v7x
topology: tpu7x:2x2x1
jax: 0.10.0
libtpu: 0.0.40
codegen_flags: <defaults>
</compile_context>

<pallas_src>
import jax
import jax.numpy as jnp
from jax import lax
from jax.experimental import pallas as pl
from jax.experimental.pallas import tpu as pltpu

Z_DIM = 100
HIDDEN = 200
OUT_C = 784
LEAKY = 0.02
LN_EPS = 1e-5

LANE = 128
SUBLANE = 8
Z_PAD = 128    # contraction dim of matmul 1, padded to a lane multiple
H_PAD = 256    # hidden dim padded to a lane multiple (matmul-1 N / matmul-2 K)


def _round_up(x, m):
    return (x + m - 1) // m * m


# --------------------------------------------------------------------------
# Kernel
# --------------------------------------------------------------------------
def _generator_kernel(x_ref, w1_ref, b1_ref, w2_ref, b2_ref, o_ref):
    # Linear 1 on the MXU: bf16 operands, f32 accumulate. (tm, 128)x(128, 256)
    h = jnp.dot(x_ref[...], w1_ref[...], preferred_element_type=jnp.float32)
    h = h + b1_ref[...]

    # LeakyReLU(0.02): mul + max (no select mask vreg).
    h = jnp.maximum(h, LEAKY * h)

    # LayerNorm over the 200 real hidden features. Padded lanes [200:256] are
    # exactly zero before centering, so full-width sum / sumsq equal the
    # true-feature sums; divide by the real feature count (torch biased var).
    inv_n = jnp.float32(1.0 / HIDDEN)
    s = jnp.sum(h, axis=-1, keepdims=True)
    ss = jnp.sum(h * h, axis=-1, keepdims=True)
    mean = s * inv_n
    var = ss * inv_n - mean * mean
    hn = (h - mean) * lax.rsqrt(var + LN_EPS)
    # gamma/beta are folded into w2/b2 by prepare_params(); padded hidden lanes
    # pick up (-mean)*rsqrt(...) here but hit zeroed w2 rows, so no leakage.

    # Linear 2 (bf16 MXU operands, f32 accumulate): (tm, 256)x(256, 784).
    y = jnp.dot(hn.astype(jnp.bfloat16), w2_ref[...],
                preferred_element_type=jnp.float32)

    # tanh in f32 on the EUP (portable to v5e), bf16 at the store only.
    o_ref[...] = jnp.tanh(y + b2_ref[...]).astype(o_ref.dtype)


# --------------------------------------------------------------------------
# One-time parameter preparation (hoisted out of the per-call hot path).
# --------------------------------------------------------------------------
def prepare_params(w1, b1, gamma, beta, w2, b2):
    # Fold LayerNorm affine into the second linear:
    #   (h*gamma + beta) @ w2 + b2 == h @ (gamma.T * w2) + (beta @ w2 + b2)
    w2f = w2 * gamma.reshape(HIDDEN, 1)
    b2f = (beta @ w2 + b2).astype(jnp.float32)            # (1, 784), stays f32

    # Zero-pad to lane-aligned shapes; zeros keep the math exact.
    w1p = jnp.zeros((Z_PAD, H_PAD), jnp.float32).at[:Z_DIM, :HIDDEN].set(w1)
    b1p = jnp.zeros((1, H_PAD), jnp.float32).at[:, :HIDDEN].set(b1)
    w2p = jnp.zeros((H_PAD, OUT_C), jnp.float32).at[:HIDDEN, :].set(w2f)

    return (w1p.astype(jnp.bfloat16),   # MXU operand
            b1p,                        # f32 bias
            w2p.astype(jnp.bfloat16),   # MXU operand
            b2f)                        # f32 bias


def _choose_tiling(batch, block_m):
    """Pick (tm, padded_batch, num_tiles): >=2 tiles when possible (v7x megacore),
    minimal row padding (multiple of 8, independent of block_m)."""
    if batch <= SUBLANE:
        num_tiles = 1
    else:
        num_tiles = max(2, pl.cdiv(batch, block_m))
    tm = min(_round_up(pl.cdiv(batch, num_tiles), SUBLANE), block_m)
    padded_batch = tm * num_tiles
    return tm, padded_batch, num_tiles


# --------------------------------------------------------------------------
# Forward wrapper
# --------------------------------------------------------------------------
def generator_forward(x, prepared, *, block_m=512):
    """x: (batch, 100) f32; prepared: output of prepare_params(). Returns bf16 (batch, 784)."""
    w1p, b1p, w2p, b2p = prepared
    batch = x.shape[0]
    tm, padded_batch, num_tiles = _choose_tiling(batch, block_m)

    # Only the activations are touched per call: pad batch rows + z lanes.
    xp = jnp.zeros((padded_batch, Z_PAD), jnp.bfloat16)
    xp = xp.at[:batch, :Z_DIM].set(x.astype(jnp.bfloat16))

    out = pl.pallas_call(
        _generator_kernel,
        out_shape=jax.ShapeDtypeStruct((padded_batch, OUT_C), jnp.bfloat16),
        grid=(num_tiles,),
        in_specs=[
            pl.BlockSpec((tm, Z_PAD), lambda i: (i, 0)),       # x tile
            pl.BlockSpec((Z_PAD, H_PAD), lambda i: (0, 0)),    # w1 (resident)
            pl.BlockSpec((1, H_PAD), lambda i: (0, 0)),        # b1 (resident)
            pl.BlockSpec((H_PAD, OUT_C), lambda i: (0, 0)),    # w2' (resident)
            pl.BlockSpec((1, OUT_C), lambda i: (0, 0)),        # b2' (resident)
        ],
        out_specs=pl.BlockSpec((tm, OUT_C), lambda i: (i, 0)),
        compiler_params=pltpu.CompilerParams(
            dimension_semantics=("parallel",),  # shard batch tiles across TCs
        ),
    )(xp, w1p, b1p, w2p, b2p)

    if padded_batch != batch:
        out = out[:batch]
    return out


# --------------------------------------------------------------------------
# Init + references
# --------------------------------------------------------------------------
def init_params(key):
    """Params mimicking PyTorch default Linear init U(-1/sqrt(fan_in), +) and LN init."""
    k1, k2, k3, k4, k5, k6 = jax.random.split(key, 6)
    lim1 = 1.0 / jnp.sqrt(jnp.float32(Z_DIM))
    lim2 = 1.0 / jnp.sqrt(jnp.float32(HIDDEN))
    w1 = jax.random.uniform(k1, (Z_DIM, HIDDEN), jnp.float32, -lim1, lim1)
    b1 = jax.random.uniform(k2, (1, HIDDEN), jnp.float32, -lim1, lim1)
    # Perturb gamma/beta away from (1, 0) so the affine-fold path is exercised.
    gamma = 1.0 + 0.1 * jax.random.normal(k5, (1, HIDDEN), jnp.float32)
    beta = 0.1 * jax.random.normal(k6, (1, HIDDEN), jnp.float32)
    w2 = jax.random.uniform(k3, (HIDDEN, OUT_C), jnp.float32, -lim2, lim2)
    b2 = jax.random.uniform(k4, (1, OUT_C), jnp.float32, -lim2, lim2)
    return w1, b1, gamma, beta, w2, b2


def reference_forward_f32(x, w1, b1, gamma, beta, w2, b2):
    """Pure f32 reference matching the PyTorch module exactly."""
    h = x @ w1 + b1
    h = jnp.where(h > 0, h, LEAKY * h)
    mean = jnp.mean(h, axis=-1, keepdims=True)
    var = jnp.mean((h - mean) ** 2, axis=-1, keepdims=True)
    h = (h - mean) / jnp.sqrt(var + LN_EPS)
    h = h * gamma + beta
    return jnp.tanh(h @ w2 + b2)


def reference_forward_matched(x, w1, b1, gamma, beta, w2, b2):
    """Reference using the same bf16 rounding / affine-fold / LN math as the kernel."""
    w2f = (w2 * gamma.reshape(HIDDEN, 1)).astype(jnp.bfloat16)
    b2f = beta @ w2 + b2
    h = jnp.dot(x.astype(jnp.bfloat16), w1.astype(jnp.bfloat16),
                preferred_element_type=jnp.float32) + b1
    h = jnp.maximum(h, LEAKY * h)
    mean = jnp.sum(h, -1, keepdims=True) / HIDDEN
    var = jnp.sum(h * h, -1, keepdims=True) / HIDDEN - mean * mean
    hn = (h - mean) * lax.rsqrt(var + LN_EPS)
    y = jnp.dot(hn.astype(jnp.bfloat16), w2f, preferred_element_type=jnp.float32) + b2f
    return jnp.tanh(y).astype(jnp.bfloat16)


if __name__ == "__main__":
    key = jax.random.PRNGKey(0)
    kx, kx2, kp = jax.random.split(key, 3)
    params = init_params(kp)
    prepared = prepare_params(*params)   # one-time prep, outside the hot path

    # Small, aligned batch (single tile path).
    batch = 8
    x = jax.random.normal(kx, (batch, Z_DIM), jnp.float32)
    out = jax.block_until_ready(generator_forward(x, prepared))
    assert out.shape == (batch, OUT_C)
    assert out.dtype == jnp.bfloat16
    out_f = out.astype(jnp.float32)
    ref_m = reference_forward_matched(x, *params).astype(jnp.float32)
    ref_f = reference_forward_f32(x, *params)
    assert jnp.allclose(out_f, ref_m, atol=2e-2, rtol=2e-2), "mismatch vs bf16-matched reference"
    assert jnp.allclose(out_f, ref_f, atol=6e-2, rtol=6e-2), "mismatch vs f32 reference"

    # Small odd batch exercises batch padding, >=2 grid tiles and row slicing.
    batch2 = 13
    x2 = jax.random.normal(kx2, (batch2, Z_DIM), jnp.float32)
    out2 = jax.block_until_ready(generator_forward(x2, prepared))
    assert out2.shape == (batch2, OUT_C)
    ref2 = reference_forward_matched(x2, *params).astype(jnp.float32)
    assert jnp.allclose(out2.astype(jnp.float32), ref2, atol=2e-2, rtol=2e-2), \
        "mismatch on padded batch"

    print("KERNEL_OK")
</pallas_src>

<mosaic_0001>
module attributes {stable_mosaic.version = 11 : i64} {
  func.func @_generator_kernel(%arg0: i32, %arg1: memref<8x128xbf16, #tpu.memory_space<vmem>>, %arg2: memref<128x256xbf16, #tpu.memory_space<vmem>>, %arg3: memref<1x256xf32, #tpu.memory_space<vmem>>, %arg4: memref<256x784xbf16, #tpu.memory_space<vmem>>, %arg5: memref<1x784xf32, #tpu.memory_space<vmem>>, %arg6: memref<8x784xbf16, #tpu.memory_space<vmem>>) attributes {dimension_semantics = [#tpu.dimension_semantics<parallel>], iteration_bounds = array<i64: 1>, scalar_prefetch = 0 : i64, scratch_operands = 0 : i64, tpu.core_type = #tpu.core_type<tc>, window_params = [{transform_indices = @transform_0, window_bounds = array<i64: 8, 128>}, {pipeline_mode = #tpu.pipeline_mode<synchronous>, transform_indices = @transform_1, window_bounds = array<i64: 128, 256>}, {pipeline_mode = #tpu.pipeline_mode<synchronous>, transform_indices = @transform_2, window_bounds = array<i64: 1, 256>}, {pipeline_mode = #tpu.pipeline_mode<synchronous>, transform_indices = @transform_3, window_bounds = array<i64: 256, 784>}, {pipeline_mode = #tpu.pipeline_mode<synchronous>, transform_indices = @transform_4, window_bounds = array<i64: 1, 784>}, {transform_indices = @transform_5, window_bounds = array<i64: 8, 784>}]} {
    %c0 = arith.constant 0 : index
    %c0_0 = arith.constant 0 : index
    %0 = vector.load %arg1[%c0, %c0_0] : memref<8x128xbf16, #tpu.memory_space<vmem>>, vector<8x128xbf16>
    %c0_1 = arith.constant 0 : index
    %c0_2 = arith.constant 0 : index
    %1 = vector.load %arg2[%c0_1, %c0_2] : memref<128x256xbf16, #tpu.memory_space<vmem>>, vector<128x256xbf16>
    %cst = arith.constant dense<0.000000e+00> : vector<8x256xf32>
    %2 = tpu.matmul %0, %1, %cst {dimension_numbers = #tpu.dot_dimension_numbers<[1], [0], [0], [1], [0, 0, 1, 1], [], []>} : vector<8x128xbf16>, vector<128x256xbf16>, vector<8x256xf32> -> vector<8x256xf32>
    %c0_3 = arith.constant 0 : index
    %c0_4 = arith.constant 0 : index
    %3 = vector.load %arg3[%c0_3, %c0_4] : memref<1x256xf32, #tpu.memory_space<vmem>>, vector<1x256xf32>
    %4 = vector.broadcast %3 : vector<1x256xf32> to vector<8x256xf32>
    %5 = arith.addf %2, %4 : vector<8x256xf32>
    %cst_5 = arith.constant 2.000000e-02 : f32
    %6 = vector.broadcast %cst_5 : f32 to vector<8x256xf32>
    %7 = arith.mulf %6, %5 : vector<8x256xf32>
    %8 = arith.maximumf %5, %7 : vector<8x256xf32>
    %cst_6 = arith.constant dense<0.000000e+00> : vector<8xf32>
    %9 = vector.multi_reduction <add>, %8, %cst_6 [1] : vector<8x256xf32> to vector<8xf32>
    %10 = vector.shape_cast %9 : vector<8xf32> to vector<8x1xf32>
    %11 = arith.mulf %8, %8 : vector<8x256xf32>
    %cst_7 = arith.constant dense<0.000000e+00> : vector<8xf32>
    %12 = vector.multi_reduction <add>, %11, %cst_7 [1] : vector<8x256xf32> to vector<8xf32>
    %13 = vector.shape_cast %12 : vector<8xf32> to vector<8x1xf32>
    %cst_8 = arith.constant 5.000000e-03 : f32
    %14 = vector.broadcast %cst_8 : f32 to vector<8x1xf32>
    %15 = arith.mulf %10, %14 : vector<8x1xf32>
    %cst_9 = arith.constant 5.000000e-03 : f32
    %16 = vector.broadcast %cst_9 : f32 to vector<8x1xf32>
    %17 = arith.mulf %13, %16 : vector<8x1xf32>
    %18 = arith.mulf %15, %15 : vector<8x1xf32>
    %19 = arith.subf %17, %18 : vector<8x1xf32>
    %20 = vector.broadcast %15 : vector<8x1xf32> to vector<8x256xf32>
    %21 = arith.subf %8, %20 : vector<8x256xf32>
    %cst_10 = arith.constant 9.99999974E-6 : f32
    %22 = vector.broadcast %cst_10 : f32 to vector<8x1xf32>
    %23 = arith.addf %19, %22 : vector<8x1xf32>
    %24 = math.rsqrt %23 : vector<8x1xf32>
    %25 = vector.broadcast %24 : vector<8x1xf32> to vector<8x256xf32>
    %26 = arith.mulf %21, %25 : vector<8x256xf32>
    %27 = arith.truncf %26 : vector<8x256xf32> to vector<8x256xbf16>
    %c0_11 = arith.constant 0 : index
    %c0_12 = arith.constant 0 : index
    %28 = vector.load %arg4[%c0_11, %c0_12] : memref<256x784xbf16, #tpu.memory_space<vmem>>, vector<256x784xbf16>
    %cst_13 = arith.constant dense<0.000000e+00> : vector<8x784xf32>
    %29 = tpu.matmul %27, %28, %cst_13 {dimension_numbers = #tpu.dot_dimension_numbers<[1], [0], [0], [1], [0, 0, 1, 1], [], []>} : vector<8x256xbf16>, vector<256x784xbf16>, vector<8x784xf32> -> vector<8x784xf32>
    %c0_14 = arith.constant 0 : index
    %c0_15 = arith.constant 0 : index
    %30 = vector.load %arg5[%c0_14, %c0_15] : memref<1x784xf32, #tpu.memory_space<vmem>>, vector<1x784xf32>
    %31 = vector.broadcast %30 : vector<1x784xf32> to vector<8x784xf32>
    %32 = arith.addf %29, %31 : vector<8x784xf32>
    %33 = math.tanh %32 : vector<8x784xf32>
    %34 = arith.truncf %33 : vector<8x784xf32> to vector<8x784xbf16>
    %c0_16 = arith.constant 0 : index
    %c0_17 = arith.constant 0 : index
    %35 = vector.load %arg6[%c0_16, %c0_17] : memref<8x784xbf16, #tpu.memory_space<vmem>>, vector<8x784xbf16>
    tpu.vector_store %arg6[%c0_16, %c0_17], %34 {strides = array<i32>} : memref<8x784xbf16, #tpu.memory_space<vmem>>, vector<8x784xbf16>,
    return
  }
  func.func @transform_0(%arg0: i32) -> (i32, i32) {
    %c0_i32 = arith.constant 0 : i32
    %c0_i32_0 = arith.constant 0 : i32
    return %arg0, %c0_i32 : i32, i32
  }
  func.func @transform_1(%arg0: i32) -> (i32, i32) {
    %c0_i32 = arith.constant 0 : i32
    %c0_i32_0 = arith.constant 0 : i32
    %c0_i32_1 = arith.constant 0 : i32
    return %c0_i32, %c0_i32_0 : i32, i32
  }
  func.func @transform_2(%arg0: i32) -> (i32, i32) {
    %c0_i32 = arith.constant 0 : i32
    %c0_i32_0 = arith.constant 0 : i32
    %c0_i32_1 = arith.constant 0 : i32
    return %c0_i32, %c0_i32_0 : i32, i32
  }
  func.func @transform_3(%arg0: i32) -> (i32, i32) {
    %c0_i32 = arith.constant 0 : i32
    %c0_i32_0 = arith.constant 0 : i32
    %c0_i32_1 = arith.constant 0 : i32
    return %c0_i32, %c0_i32_0 : i32, i32
  }
  func.func @transform_4(%arg0: i32) -> (i32, i32) {
    %c0_i32 = arith.constant 0 : i32
    %c0_i32_0 = arith.constant 0 : i32
    %c0_i32_1 = arith.constant 0 : i32
    return %c0_i32, %c0_i32_0 : i32, i32
  }
  func.func @transform_5(%arg0: i32) -> (i32, i32) {
    %c0_i32 = arith.constant 0 : i32
    %c0_i32_0 = arith.constant 0 : i32
    return %arg0, %c0_i32 : i32, i32
  }
}

</mosaic_0001>

<llo_original>
// kernel: tpu_custom_call.1
$region0: #{tpu_custom_call.1}
  #allocation0 [shape = 'u32[]', space=smem, size = 0x4, offset = 0x4, fixed_abs, tag = 'smem constant byte address 0x4 - core index']
  #allocation1 [shape = 'u32[144,128]{1,0:T(1,128)}', space=vmem, size = 0x12000, scoped, tag = 'internal scratch']
  %s0 = inlined_call_operand.vmem [shape: bf16[8,128], index: 0, kind: input, shape index: {}]
  %s1 = inlined_call_operand.vmem [shape: bf16[128,256], index: 1, kind: input, shape index: {}]
  %s2 = inlined_call_operand.vmem [shape: f32[1,256], index: 2, kind: input, shape index: {}]
  %s3 = inlined_call_operand.vmem [shape: bf16[256,784], index: 3, kind: input, shape index: {}]
  %s4 = inlined_call_operand.vmem [shape: f32[1,784], index: 4, kind: input, shape index: {}]
  %s5 = inlined_call_operand.hbm [shape: bf16[8,784], index: 5, kind: output, shape index: {}]
  %s6 = sld [smem:[#allocation0]]
  $region30: #{tpu_custom_call.1} parent=0
    _
  %s8 = ssub.s32 1, %s6
  %s9 = scalar_select 0, %s8, %s6
  $region1: #{tpu_custom_call.1} parent=0
    #allocation2 [shape = 'u8[14336]{0}', space=vmem, size = 0x3800, scoped, tag = 'output window, operand 0, single buffered']
    #allocation3 [shape = 's32[1]{0}', space=sflag, size = 0x4, scoped, tag = 'scoped memory for tpu_custom_call.1']
    %10 = vsyncpa [#allocation3], 0
    // Predicated region
    $region2: #{tpu_custom_call.1} parent=1 // pred_check
      _
    $region3: #{tpu_custom_call.1} parent=1 // pred_check_branch
      %12 = sbr.rel (0) target = $region5
    $region4: #{tpu_custom_call.1} parent=1 // pred_region
      _
    $region5: #{tpu_custom_call.1} parent=1 // pred_fallthru
      _
    // Predicated region
    $region6: #{tpu_custom_call.1} parent=1 // pred_check
      _
    $region7: #{tpu_custom_call.1} parent=1 // pred_check_branch
      %14 = sbr.rel (0) target = $region9
    $region8: #{tpu_custom_call.1} parent=1 // pred_region
      _
    $region9: #{tpu_custom_call.1} parent=1 // pred_fallthru
      _
    // Predicated region
    $region10: #{tpu_custom_call.1} parent=1 // pred_check
      _
    $region11: #{tpu_custom_call.1} parent=1 // pred_check_branch
      %16 = sbr.rel (0) target = $region13
    $region12: #{tpu_custom_call.1} parent=1 // pred_region
      _
    $region13: #{tpu_custom_call.1} parent=1 // pred_fallthru
      _
    // Predicated region
    $region14: #{tpu_custom_call.1} parent=1 // pred_check
      _
    $region15: #{tpu_custom_call.1} parent=1 // pred_check_branch
      %18 = sbr.rel (0) target = $region17
    $region16: #{tpu_custom_call.1} parent=1 // pred_region
      _
    $region17: #{tpu_custom_call.1} parent=1 // pred_fallthru
      _
    // Predicated region
    $region18: #{tpu_custom_call.1} parent=1 // pred_check
      _
    $region19: #{tpu_custom_call.1} parent=1 // pred_check_branch
      %20 = sbr.rel (0) target = $region21
    $region20: #{tpu_custom_call.1} parent=1 // pred_region
      _
    $region21: #{tpu_custom_call.1} parent=1 // pred_fallthru
      _
    %v22 = vld [vmem:[%s0] sm:$0xf]
    %v23 = vld [vmem:[%s1] sm:$0xff]
    %v24 = vld [vmem:[%s1 + $0x8] sm:$0xff]
    %v25 = vld [vmem:[%s1 + $0x10] sm:$0xff]
    %v26 = vld [vmem:[%s1 + $0x18] sm:$0xff]
    %v27 = vld [vmem:[%s1 + $0x20] sm:$0xff]
    %v28 = vld [vmem:[%s1 + $0x28] sm:$0xff]
    %v29 = vld [vmem:[%s1 + $0x30] sm:$0xff]
    %v30 = vld [vmem:[%s1 + $0x38] sm:$0xff]
    %v31 = vld [vmem:[%s1 + $0x40] sm:$0xff]
    %v32 = vld [vmem:[%s1 + $0x48] sm:$0xff]
    %v33 = vld [vmem:[%s1 + $0x50] sm:$0xff]
    %v34 = vld [vmem:[%s1 + $0x58] sm:$0xff]
    %v35 = vld [vmem:[%s1 + $0x60] sm:$0xff]
    %v36 = vld [vmem:[%s1 + $0x68] sm:$0xff]
    %v37 = vld [vmem:[%s1 + $0x70] sm:$0xff]
    %v38 = vld [vmem:[%s1 + $0x78] sm:$0xff]
    %v39 = vld [vmem:[%s2] sm:$0x3]
    %v41 = vlaneseq
    %v42 = vshrl.u32 %v41, 7
    %v43 = vsub.s32 0, %v42
    %v44 = vrot.slane %v39, %v43
    %v45 = vlaneseq
    %v46 = vshrl.u32 %v45, 7
    %v47 = vsub.s32 1, %v46
    %v48 = vrot.slane %v39, %v47
    %v67 = vunpack.c.l.b16 %v23
    %v68 = vunpack.c.h.b16 %v23
    %v69 = vunpack.c.l.b16 %v24
    %v70 = vunpack.c.h.b16 %v24
    %v71 = vunpack.c.l.b16 %v25
    %v72 = vunpack.c.h.b16 %v25
    %v73 = vunpack.c.l.b16 %v26
    %v74 = vunpack.c.h.b16 %v26
    %v75 = vunpack.c.l.b16 %v27
    %v76 = vunpack.c.h.b16 %v27
    %v77 = vunpack.c.l.b16 %v28
    %v78 = vunpack.c.h.b16 %v28
    %v79 = vunpack.c.l.b16 %v29
    %v80 = vunpack.c.h.b16 %v29
    %v81 = vunpack.c.l.b16 %v30
    %v82 = vunpack.c.h.b16 %v30
    %v83 = vunpack.c.l.b16 %v31
    %v84 = vunpack.c.h.b16 %v31
    %v85 = vunpack.c.l.b16 %v32
    %v86 = vunpack.c.h.b16 %v32
    %v87 = vunpack.c.l.b16 %v33
    %v88 = vunpack.c.h.b16 %v33
    %v89 = vunpack.c.l.b16 %v34
    %v90 = vunpack.c.h.b16 %v34
    %v91 = vunpack.c.l.b16 %v35
    %v92 = vunpack.c.h.b16 %v35
    %v93 = vunpack.c.l.b16 %v36
    %v94 = vunpack.c.h.b16 %v36
    %v95 = vunpack.c.l.b16 %v37
    %v96 = vunpack.c.h.b16 %v37
    %v97 = vunpack.c.l.b16 %v38
    %v98 = vunpack.c.h.b16 %v38
    %v99 = vpack.c.b16 %v69, %v67
    %v100 = vpack.c.b16 %v70, %v68
    %v101 = vpack.c.b16 %v73, %v71
    %v102 = vpack.c.b16 %v74, %v72
    %v103 = vpack.c.b16 %v77, %v75
    %v104 = vpack.c.b16 %v78, %v76
    %v105 = vpack.c.b16 %v81, %v79
    %v106 = vpack.c.b16 %v82, %v80
    %v107 = vpack.c.b16 %v85, %v83
    %v108 = vpack.c.b16 %v86, %v84
    %v109 = vpack.c.b16 %v89, %v87
    %v110 = vpack.c.b16 %v90, %v88
    %v111 = vpack.c.b16 %v93, %v91
    %v112 = vpack.c.b16 %v94, %v92
    %v113 = vpack.c.b16 %v97, %v95
    %v114 = vpack.c.b16 %v98, %v96
    %131 = vmatprep.subr.bf16.mxu0 %v100
    %132 = vmatpush1.bf16.msra.mxu0 %v99
    %133 = vmatprep.subr.bf16.mxu0 %v102
    %134 = vmatpush1.bf16.msra.mxu0 %v101
    %135 = vmatprep.subr.bf16.mxu0 %v104
    %136 = vmatpush1.bf16.msra.mxu0 %v103
    %137 = vmatprep.subr.bf16.mxu0 %v106
    %138 = vmatpush1.bf16.msra.mxu0 %v105
    %139 = vmatprep.subr.bf16.mxu0 %v108
    %140 = vmatpush1.bf16.msra.mxu0 %v107
    %141 = vmatprep.subr.bf16.mxu0 %v110
    %142 = vmatpush1.bf16.msra.mxu0 %v109
    %143 = vmatprep.subr.bf16.mxu0 %v112
    %144 = vmatpush1.bf16.msra.mxu0 %v111
    %145 = vmatprep.subr.bf16.mxu0 %v114
    %146 = vmatpush1.bf16.msra.mxu0 %v113
    %147 = vmatprep.subr.bf16.mxu0 0
    %148 = vmatpush1.bf16.msra.mxu0 0
    %149 = vmatprep.subr.bf16.mxu0 0
    %150 = vmatpush1.bf16.msra.mxu0 0
    %151 = vmatprep.subr.bf16.mxu0 0
    %152 = vmatpush1.bf16.msra.mxu0 0
    %153 = vmatprep.subr.bf16.mxu0 0
    %154 = vmatpush1.bf16.msra.mxu0 0
    %155 = vmatprep.subr.bf16.mxu0 0
    %156 = vmatpush1.bf16.msra.mxu0 0
    %157 = vmatprep.subr.bf16.mxu0 0
    %158 = vmatpush1.bf16.msra.mxu0 0
    %159 = vmatprep.subr.bf16.mxu0 0
    %160 = vmatpush1.bf16.msra.mxu0 0
    %161 = vmatprep.subr.bf16.mxu0 0
    %162 = vmatpush1.bf16.msra.mxu0 0
    %163 = vmatprep.mubr.bf16.mxu0 0
    %164 = vmatmul.mubr.bf16.gmra.mrb[0].mxu0 %v22
    %v165 = vpop.f32.mrb[0].mxu0
    %v166 = vadd.f32 %v44, %v165
    %v167 = vpop.f32.mrb[0].mxu0
    %v168 = vadd.f32 %v48, %v167
    %v169 = vpop.f32.mrb[0].mxu0
    %v170 = vpop.f32.mrb[0].mxu0
    %171 = vdwg.mxu0
    %v172 = vmul.f32 %v166, 0.02
    %v173 = vmul.f32 %v168, 0.02
    %v174 = vmax.f32 %v166, %v172
    %v175 = vmax.f32 %v168, %v173
    %v176 = vadd.f32 %v174, %v175
    %177 = vadd.xlane.f32.xlu0 %v176
    %v178 = vpop.xlane.xlu0 %177
    %v179 = vmul.f32 %v174, %v174
    %v180 = vmul.f32 %v175, %v175
    %v181 = vadd.f32 %v179, %v180
    %182 = vadd.xlane.f32.xlu0 %v181
    %v183 = vpop.xlane.xlu0 %182
    %v184 = vmul.f32 %v178, 0.005
    %v185 = vmul.f32 %v183, 0.005
    %v186 = vmul.f32 %v184, %v184
    %v187 = vsub.f32 %v185, %v186
    %v188 = vsub.f32 %v174, %v184
    %v189 = vsub.f32 %v175, %v184
    %v190 = vadd.f32 %v187, 1e-05
    %v191 = vrsqrt.pop %v190
    %v192 = vmul.f32 %v188, %v191
    %v193 = vmul.f32 %v189, %v191
    %v194 = vpack.c.bf16 %v192, %v192
    %v195 = vpack.c.bf16 %v193, %v193
    %v196 = vld [vmem:[%s3] sm:$0xff]
    %v197 = vld [vmem:[%s3 + $0x8] sm:$0xff]
    %v198 = vld [vmem:[%s3 + $0x10] sm:$0xff]
    %v199 = vld [vmem:[%s3 + $0x18] sm:$0xf]
    %v200 = vld [vmem:[%s3 + $0x1c] sm:$0xff]
    %v201 = vld [vmem:[%s3 + $0x24] sm:$0xff]
    %v202 = vld [vmem:[%s3 + $0x2c] sm:$0xff]
    %v203 = vld [vmem:[%s3 + $0x34] sm:$0xf]
    %v204 = vld [vmem:[%s3 + $0x38] sm:$0xff]
    %v205 = vld [vmem:[%s3 + $0x40] sm:$0xff]
    %v206 = vld [vmem:[%s3 + $0x48] sm:$0xff]
    %v207 = vld [vmem:[%s3 + $0x50] sm:$0xf]
    %v208 = vld [vmem:[%s3 + $0x54] sm:$0xff]
    %v209 = vld [vmem:[%s3 + $0x5c] sm:$0xff]
    %v210 = vld [vmem:[%s3 + $0x64] sm:$0xff]
    %v211 = vld [vmem:[%s3 + $0x6c] sm:$0xf]
    %v212 = vld [vmem:[%s3 + $0x70] sm:$0xff]
    %v213 = vld [vmem:[%s3 + $0x78] sm:$0xff]
    %v214 = vld [vmem:[%s3 + $0x80] sm:$0xff]
    %v215 = vld [vmem:[%s3 + $0x88] sm:$0xf]
    %v216 = vld [vmem:[%s3 + $0x8c] sm:$0xff]
    %v217 = vld [vmem:[%s3 + $0x94] sm:$0xff]
    %v218 = vld [vmem:[%s3 + $0x9c] sm:$0xff]
    %v219 = vld [vmem:[%s3 + $0xa4] sm:$0xf]
    %v220 = vld [vmem:[%s3 + $0xa8] sm:$0xff]
    %v221 = vld [vmem:[%s3 + $0xb0] sm:$0xff]
    %v222 = vld [vmem:[%s3 + $0xb8] sm:$0xff]
    %v223 = vld [vmem:[%s3 + $0xc0] sm:$0xf]
    %v224 = vld [vmem:[%s3 + $0xc4] sm:$0xff]
    %v225 = vld [vmem:[%s3 + $0xcc] sm:$0xff]
    %v226 = vld [vmem:[%s3 + $0xd4] sm:$0xff]
    %v227 = vld [vmem:[%s3 + $0xdc] sm:$0xf]
    %v228 = vld [vmem:[%s3 + $0xe0] sm:$0xff]
    %v229 = vld [vmem:[%s3 + $0xe8] sm:$0xff]
    %v230 = vld [vmem:[%s3 + $0xf0] sm:$0xff]
    %v231 = vld [vmem:[%s3 + $0xf8] sm:$0xf]
    %v232 = vld [vmem:[%s3 + $0xfc] sm:$0xff]
    %v233 = vld [vmem:[%s3 + $0x104] sm:$0xff]
    %v234 = vld [vmem:[%s3 + $0x10c] sm:$0xff]
    %v235 = vld [vmem:[%s3 + $0x114] sm:$0xf]
    %v236 = vld [vmem:[%s3 + $0x118] sm:$0xff]
    %v237 = vld [vmem:[%s3 + $0x120] sm:$0xff]
    %v238 = vld [vmem:[%s3 + $0x128] sm:$0xff]
    %v239 = vld [vmem:[%s3 + $0x130] sm:$0xf]
    %v240 = vld [vmem:[%s3 + $0x134] sm:$0xff]
    %v241 = vld [vmem:[%s3 + $0x13c] sm:$0xff]
    %v242 = vld [vmem:[%s3 + $0x144] sm:$0xff]
    %v243 = vld [vmem:[%s3 + $0x14c] sm:$0xf]
    %v244 = vld [vmem:[%s3 + $0x150] sm:$0xff]
    %v245 = vld [vmem:[%s3 + $0x158] sm:$0xff]
    %v246 = vld [vmem:[%s3 + $0x160] sm:$0xff]
    %v247 = vld [vmem:[%s3 + $0x168] sm:$0xf]
    %v248 = vld [vmem:[%s3 + $0x16c] sm:$0xff]
    %v249 = vld [vmem:[%s3 + $0x174] sm:$0xff]
    %v250 = vld [vmem:[%s3 + $0x17c] sm:$0xff]
    %v251 = vld [vmem:[%s3 + $0x184] sm:$0xf]
    %v252 = vld [vmem:[%s3 + $0x188] sm:$0xff]
    %v253 = vld [vmem:[%s3 + $0x190] sm:$0xff]
    %v254 = vld [vmem:[%s3 + $0x198] sm:$0xff]
    %v255 = vld [vmem:[%s3 + $0x1a0] sm:$0xf]
    %v256 = vld [vmem:[%s3 + $0x1a4] sm:$0xff]
    %v257 = vld [vmem:[%s3 + $0x1ac] sm:$0xff]
    %v258 = vld [vmem:[%s3 + $0x1b4] sm:$0xff]
    %v259 = vld [vmem:[%s3 + $0x1bc] sm:$0xf]
    %v260 = vld [vmem:[%s3 + $0x1c0] sm:$0xff]
    %v261 = vld [vmem:[%s3 + $0x1c8] sm:$0xff]
    %v262 = vld [vmem:[%s3 + $0x1d0] sm:$0xff]
    %v263 = vld [vmem:[%s3 + $0x1d8] sm:$0xf]
    %v264 = vld [vmem:[%s3 + $0x1dc] sm:$0xff]
    %v265 = vld [vmem:[%s3 + $0x1e4] sm:$0xff]
    %v266 = vld [vmem:[%s3 + $0x1ec] sm:$0xff]
    %v267 = vld [vmem:[%s3 + $0x1f4] sm:$0xf]
    %v268 = vld [vmem:[%s3 + $0x1f8] sm:$0xff]
    %v269 = vld [vmem:[%s3 + $0x200] sm:$0xff]
    %v270 = vld [vmem:[%s3 + $0x208] sm:$0xff]
    %v271 = vld [vmem:[%s3 + $0x210] sm:$0xf]
    %v272 = vld [vmem:[%s3 + $0x214] sm:$0xff]
    %v273 = vld [vmem:[%s3 + $0x21c] sm:$0xff]
    %v274 = vld [vmem:[%s3 + $0x224] sm:$0xff]
    %v275 = vld [vmem:[%s3 + $0x22c] sm:$0xf]
    %v276 = vld [vmem:[%s3 + $0x230] sm:$0xff]
    %v277 = vld [vmem:[%s3 + $0x238] sm:$0xff]
    %v278 = vld [vmem:[%s3 + $0x240] sm:$0xff]
    %v279 = vld [vmem:[%s3 + $0x248] sm:$0xf]
    %v280 = vld [vmem:[%s3 + $0x24c] sm:$0xff]
    %v281 = vld [vmem:[%s3 + $0x254] sm:$0xff]
    %v282 = vld [vmem:[%s3 + $0x25c] sm:$0xff]
    %v283 = vld [vmem:[%s3 + $0x264] sm:$0xf]
    %v284 = vld [vmem:[%s3 + $0x268] sm:$0xff]
    %v285 = vld [vmem:[%s3 + $0x270] sm:$0xff]
    %v286 = vld [vmem:[%s3 + $0x278] sm:$0xff]
    %v287 = vld [vmem:[%s3 + $0x280] sm:$0xf]
    %v288 = vld [vmem:[%s3 + $0x284] sm:$0xff]
    %v289 = vld [vmem:[%s3 + $0x28c] sm:$0xff]
    %v290 = vld [vmem:[%s3 + $0x294] sm:$0xff]
    %v291 = vld [vmem:[%s3 + $0x29c] sm:$0xf]
    %v292 = vld [vmem:[%s3 + $0x2a0] sm:$0xff]
    %v293 = vld [vmem:[%s3 + $0x2a8] sm:$0xff]
    %v294 = vld [vmem:[%s3 + $0x2b0] sm:$0xff]
    %v295 = vld [vmem:[%s3 + $0x2b8] sm:$0xf]
    %v296 = vld [vmem:[%s3 + $0x2bc] sm:$0xff]
    %v297 = vld [vmem:[%s3 + $0x2c4] sm:$0xff]
    %v298 = vld [vmem:[%s3 + $0x2cc] sm:$0xff]
    %v299 = vld [vmem:[%s3 + $0x2d4] sm:$0xf]
    %v300 = vld [vmem:[%s3 + $0x2d8] sm:$0xff]
    %v301 = vld [vmem:[%s3 + $0x2e0] sm:$0xff]
    %v302 = vld [vmem:[%s3 + $0x2e8] sm:$0xff]
    %v303 = vld [vmem:[%s3 + $0x2f0] sm:$0xf]
    %v304 = vld [vmem:[%s3 + $0x2f4] sm:$0xff]
    %v305 = vld [vmem:[%s3 + $0x2fc] sm:$0xff]
    %v306 = vld [vmem:[%s3 + $0x304] sm:$0xff]
    %v307 = vld [vmem:[%s3 + $0x30c] sm:$0xf]
    %v308 = vld [vmem:[%s3 + $0x310] sm:$0xff]
    %v309 = vld [vmem:[%s3 + $0x318] sm:$0xff]
    %v310 = vld [vmem:[%s3 + $0x320] sm:$0xff]
    %v311 = vld [vmem:[%s3 + $0x328] sm:$0xf]
    %v312 = vld [vmem:[%s3 + $0x32c] sm:$0xff]
    %v313 = vld [vmem:[%s3 + $0x334] sm:$0xff]
    %v314 = vld [vmem:[%s3 + $0x33c] sm:$0xff]
    %v315 = vld [vmem:[%s3 + $0x344] sm:$0xf]
    %v316 = vld [vmem:[%s3 + $0x348] sm:$0xff]
    %v317 = vld [vmem:[%s3 + $0x350] sm:$0xff]
    %v318 = vld [vmem:[%s3 + $0x358] sm:$0xff]
    %v319 = vld [vmem:[%s3 + $0x360] sm:$0xf]
    %v320 = vld [vmem:[%s3 + $0x364] sm:$0xff]
    %v321 = vld [vmem:[%s3 + $0x36c] sm:$0xff]
    %v322 = vld [vmem:[%s3 + $0x374] sm:$0xff]
    %v323 = vld [vmem:[%s3 + $0x37c] sm:$0xf]
    %v324 = vld [vmem:[%s4] sm:$0x7f]
    %v326 = vlaneseq
    %v327 = vshrl.u32 %v326, 7
    %v328 = vsub.s32 0, %v327
    %v329 = vrot.slane %v324, %v328
    %v330 = vlaneseq
    %v331 = vshrl.u32 %v330, 7
    %v332 = vsub.s32 1, %v331
    %v333 = vrot.slane %v324, %v332
    %v334 = vlaneseq
    %v335 = vshrl.u32 %v334, 7
    %v336 = vsub.s32 2, %v335
    %v337 = vrot.slane %v324, %v336
    %v338 = vlaneseq
    %v339 = vshrl.u32 %v338, 7
    %v340 = vsub.s32 3, %v339
    %v341 = vrot.slane %v324, %v340
    %v342 = vlaneseq
    %v343 = vshrl.u32 %v342, 7
    %v344 = vsub.s32 4, %v343
    %v345 = vrot.slane %v324, %v344
    %v346 = vlaneseq
    %v347 = vshrl.u32 %v346, 7
    %v348 = vsub.s32 5, %v347
    %v349 = vrot.slane %v324, %v348
    %v350 = vlaneseq
    %v351 = vshrl.u32 %v350, 7
    %v352 = vsub.s32 6, %v351
    %v353 = vrot.slane %v324, %v352
    %v489 = vunpack.c.l.b16 %v196
    %v490 = vunpack.c.h.b16 %v196
    %v491 = vunpack.c.l.b16 %v197
    %v492 = vunpack.c.h.b16 %v197
    %v493 = vunpack.c.l.b16 %v198
    %v494 = vunpack.c.h.b16 %v198
    %v495 = vunpack.c.l.b16 %v199
    %v496 = vunpack.c.l.b16 %v200
    %v497 = vunpack.c.h.b16 %v200
    %v498 = vunpack.c.l.b16 %v201
    %v499 = vunpack.c.h.b16 %v201
    %v500 = vunpack.c.l.b16 %v202
    %v501 = vunpack.c.h.b16 %v202
    %v502 = vunpack.c.l.b16 %v203
    %v503 = vunpack.c.l.b16 %v204
    %v504 = vunpack.c.h.b16 %v204
    %v505 = vunpack.c.l.b16 %v205
    %v506 = vunpack.c.h.b16 %v205
    %v507 = vunpack.c.l.b16 %v206
    %v508 = vunpack.c.h.b16 %v206
    %v509 = vunpack.c.l.b16 %v207
    %v510 = vunpack.c.l.b16 %v208
    %v511 = vunpack.c.h.b16 %v208
    %v512 = vunpack.c.l.b16 %v209
    %v513 = vunpack.c.h.b16 %v209
    %v514 = vunpack.c.l.b16 %v210
    %v515 = vunpack.c.h.b16 %v210
    %v516 = vunpack.c.l.b16 %v211
    %v517 = vunpack.c.l.b16 %v212
    %v518 = vunpack.c.h.b16 %v212
    %v519 = vunpack.c.l.b16 %v213
    %v520 = vunpack.c.h.b16 %v213
    %v521 = vunpack.c.l.b16 %v214
    %v522 = vunpack.c.h.b16 %v214
    %v523 = vunpack.c.l.b16 %v215
    %v524 = vunpack.c.l.b16 %v216
    %v525 = vunpack.c.h.b16 %v216
    %v526 = vunpack.c.l.b16 %v217
    %v527 = vunpack.c.h.b16 %v217
    %v528 = vunpack.c.l.b16 %v218
    %v529 = vunpack.c.h.b16 %v218
    %v530 = vunpack.c.l.b16 %v219
    %v531 = vunpack.c.l.b16 %v220
    %v532 = vunpack.c.h.b16 %v220
    %v533 = vunpack.c.l.b16 %v221
    %v534 = vunpack.c.h.b16 %v221
    %v535 = vunpack.c.l.b16 %v222
    %v536 = vunpack.c.h.b16 %v222
    %v537 = vunpack.c.l.b16 %v223
    %v538 = vunpack.c.l.b16 %v224
    %v539 = vunpack.c.h.b16 %v224
    %v540 = vunpack.c.l.b16 %v225
    %v541 = vunpack.c.h.b16 %v225
    %v542 = vunpack.c.l.b16 %v226
    %v543 = vunpack.c.h.b16 %v226
    %v544 = vunpack.c.l.b16 %v227
    %v545 = vunpack.c.l.b16 %v228
    %v546 = vunpack.c.h.b16 %v228
    %v547 = vunpack.c.l.b16 %v229
    %v548 = vunpack.c.h.b16 %v229
    %v549 = vunpack.c.l.b16 %v230
    %v550 = vunpack.c.h.b16 %v230
    %v551 = vunpack.c.l.b16 %v231
    %v552 = vunpack.c.l.b16 %v232
    %v553 = vunpack.c.h.b16 %v232
    %v554 = vunpack.c.l.b16 %v233
    %v555 = vunpack.c.h.b16 %v233
    %v556 = vunpack.c.l.b16 %v234
    %v557 = vunpack.c.h.b16 %v234
    %v558 = vunpack.c.l.b16 %v235
    %v559 = vunpack.c.l.b16 %v236
    %v560 = vunpack.c.h.b16 %v236
    %v561 = vunpack.c.l.b16 %v237
    %v562 = vunpack.c.h.b16 %v237
    %v563 = vunpack.c.l.b16 %v238
    %v564 = vunpack.c.h.b16 %v238
    %v565 = vunpack.c.l.b16 %v239
    %v566 = vunpack.c.l.b16 %v240
    %v567 = vunpack.c.h.b16 %v240
    %v568 = vunpack.c.l.b16 %v241
    %v569 = vunpack.c.h.b16 %v241
    %v570 = vunpack.c.l.b16 %v242
    %v571 = vunpack.c.h.b16 %v242
    %v572 = vunpack.c.l.b16 %v243
    %v573 = vunpack.c.l.b16 %v244
    %v574 = vunpack.c.h.b16 %v244
    %v575 = vunpack.c.l.b16 %v245
    %v576 = vunpack.c.h.b16 %v245
    %v577 = vunpack.c.l.b16 %v246
    %v578 = vunpack.c.h.b16 %v246
    %v579 = vunpack.c.l.b16 %v247
    %v580 = vunpack.c.l.b16 %v248
    %v581 = vunpack.c.h.b16 %v248
    %v582 = vunpack.c.l.b16 %v249
    %v583 = vunpack.c.h.b16 %v249
    %v584 = vunpack.c.l.b16 %v250
    %v585 = vunpack.c.h.b16 %v250
    %v586 = vunpack.c.l.b16 %v251
    %v587 = vunpack.c.l.b16 %v252
    %v588 = vunpack.c.h.b16 %v252
    %v589 = vunpack.c.l.b16 %v253
    %v590 = vunpack.c.h.b16 %v253
    %v591 = vunpack.c.l.b16 %v254
    %v592 = vunpack.c.h.b16 %v254
    %v593 = vunpack.c.l.b16 %v255
    %v594 = vunpack.c.l.b16 %v256
    %v595 = vunpack.c.h.b16 %v256
    %v596 = vunpack.c.l.b16 %v257
    %v597 = vunpack.c.h.b16 %v257
    %v598 = vunpack.c.l.b16 %v258
    %v599 = vunpack.c.h.b16 %v258
    %v600 = vunpack.c.l.b16 %v259
    %v601 = vunpack.c.l.b16 %v260
    %v602 = vunpack.c.h.b16 %v260
    %v603 = vunpack.c.l.b16 %v261
    %v604 = vunpack.c.h.b16 %v261
    %v605 = vunpack.c.l.b16 %v262
    %v606 = vunpack.c.h.b16 %v262
    %v607 = vunpack.c.l.b16 %v263
    %v608 = vunpack.c.l.b16 %v264
    %v609 = vunpack.c.h.b16 %v264
    %v610 = vunpack.c.l.b16 %v265
    %v611 = vunpack.c.h.b16 %v265
    %v612 = vunpack.c.l.b16 %v266
    %v613 = vunpack.c.h.b16 %v266
    %v614 = vunpack.c.l.b16 %v267
    %v615 = vunpack.c.l.b16 %v268
    %v616 = vunpack.c.h.b16 %v268
    %v617 = vunpack.c.l.b16 %v269
    %v618 = vunpack.c.h.b16 %v269
    %v619 = vunpack.c.l.b16 %v270
    %v620 = vunpack.c.h.b16 %v270
    %v621 = vunpack.c.l.b16 %v271
    %v622 = vunpack.c.l.b16 %v272
    %v623 = vunpack.c.h.b16 %v272
    %v624 = vunpack.c.l.b16 %v273
    %v625 = vunpack.c.h.b16 %v273
    %v626 = vunpack.c.l.b16 %v274
    %v627 = vunpack.c.h.b16 %v274
    %v628 = vunpack.c.l.b16 %v275
    %v629 = vunpack.c.l.b16 %v276
    %v630 = vunpack.c.h.b16 %v276
    %v631 = vunpack.c.l.b16 %v277
    %v632 = vunpack.c.h.b16 %v277
    %v633 = vunpack.c.l.b16 %v278
    %v634 = vunpack.c.h.b16 %v278
    %v635 = vunpack.c.l.b16 %v279
    %v636 = vunpack.c.l.b16 %v280
    %v637 = vunpack.c.h.b16 %v280
    %v638 = vunpack.c.l.b16 %v281
    %v639 = vunpack.c.h.b16 %v281
    %v640 = vunpack.c.l.b16 %v282
    %v641 = vunpack.c.h.b16 %v282
    %v642 = vunpack.c.l.b16 %v283
    %v643 = vunpack.c.l.b16 %v284
    %v644 = vunpack.c.h.b16 %v284
    %v645 = vunpack.c.l.b16 %v285
    %v646 = vunpack.c.h.b16 %v285
    %v647 = vunpack.c.l.b16 %v286
    %v648 = vunpack.c.h.b16 %v286
    %v649 = vunpack.c.l.b16 %v287
    %v650 = vunpack.c.l.b16 %v288
    %v651 = vunpack.c.h.b16 %v288
    %v652 = vunpack.c.l.b16 %v289
    %v653 = vunpack.c.h.b16 %v289
    %v654 = vunpack.c.l.b16 %v290
    %v655 = vunpack.c.h.b16 %v290
    %v656 = vunpack.c.l.b16 %v291
    %v657 = vunpack.c.l.b16 %v292
    %v658 = vunpack.c.h.b16 %v292
    %v659 = vunpack.c.l.b16 %v293
    %v660 = vunpack.c.h.b16 %v293
    %v661 = vunpack.c.l.b16 %v294
    %v662 = vunpack.c.h.b16 %v294
    %v663 = vunpack.c.l.b16 %v295
    %v664 = vunpack.c.l.b16 %v296
    %v665 = vunpack.c.h.b16 %v296
    %v666 = vunpack.c.l.b16 %v297
    %v667 = vunpack.c.h.b16 %v297
    %v668 = vunpack.c.l.b16 %v298
    %v669 = vunpack.c.h.b16 %v298
    %v670 = vunpack.c.l.b16 %v299
    %v671 = vunpack.c.l.b16 %v300
    %v672 = vunpack.c.h.b16 %v300
    %v673 = vunpack.c.l.b16 %v301
    %v674 = vunpack.c.h.b16 %v301
    %v675 = vunpack.c.l.b16 %v302
    %v676 = vunpack.c.h.b16 %v302
    %v677 = vunpack.c.l.b16 %v303
    %v678 = vunpack.c.l.b16 %v304
    %v679 = vunpack.c.h.b16 %v304
    %v680 = vunpack.c.l.b16 %v305
    %v681 = vunpack.c.h.b16 %v305
    %v682 = vunpack.c.l.b16 %v306
    %v683 = vunpack.c.h.b16 %v306
    %v684 = vunpack.c.l.b16 %v307
    %v685 = vunpack.c.l.b16 %v308
    %v686 = vunpack.c.h.b16 %v308
    %v687 = vunpack.c.l.b16 %v309
    %v688 = vunpack.c.h.b16 %v309
    %v689 = vunpack.c.l.b16 %v310
    %v690 = vunpack.c.h.b16 %v310
    %v691 = vunpack.c.l.b16 %v311
    %v692 = vunpack.c.l.b16 %v312
    %v693 = vunpack.c.h.b16 %v312
    %v694 = vunpack.c.l.b16 %v313
    %v695 = vunpack.c.h.b16 %v313
    %v696 = vunpack.c.l.b16 %v314
    %v697 = vunpack.c.h.b16 %v314
    %v698 = vunpack.c.l.b16 %v315
    %v699 = vunpack.c.l.b16 %v316
    %v700 = vunpack.c.h.b16 %v316
    %v701 = vunpack.c.l.b16 %v317
    %v702 = vunpack.c.h.b16 %v317
    %v703 = vunpack.c.l.b16 %v318
    %v704 = vunpack.c.h.b16 %v318
    %v705 = vunpack.c.l.b16 %v319
    %v706 = vunpack.c.l.b16 %v320
    %v707 = vunpack.c.h.b16 %v320
    %v708 = vunpack.c.l.b16 %v321
    %v709 = vunpack.c.h.b16 %v321
    %v710 = vunpack.c.l.b16 %v322
    %v711 = vunpack.c.h.b16 %v322
    %v712 = vunpack.c.l.b16 %v323
    %v713 = vpack.c.b16 %v496, %v489
    %v714 = vpack.c.b16 %v497, %v490
    %v715 = vpack.c.b16 %v498, %v491
    %v716 = vpack.c.b16 %v499, %v492
    %v717 = vpack.c.b16 %v500, %v493
    %v718 = vpack.c.b16 %v501, %v494
    %v719 = vpack.c.b16 %v502, %v495
    %v720 = vpack.c.b16 %v510, %v503
    %v721 = vpack.c.b16 %v511, %v504
    %v722 = vpack.c.b16 %v512, %v505
    %v723 = vpack.c.b16 %v513, %v506
    %v724 = vpack.c.b16 %v514, %v507
    %v725 = vpack.c.b16 %v515, %v508
    %v726 = vpack.c.b16 %v516, %v509
    %v727 = vpack.c.b16 %v524, %v517
    %v728 = vpack.c.b16 %v525, %v518
    %v729 = vpack.c.b16 %v526, %v519
    %v730 = vpack.c.b16 %v527, %v520
    %v731 = vpack.c.b16 %v528, %v521
    %v732 = vpack.c.b16 %v529, %v522
    %v733 = vpack.c.b16 %v530, %v523
    %v734 = vpack.c.b16 %v538, %v531
    %v735 = vpack.c.b16 %v539, %v532
    %v736 = vpack.c.b16 %v540, %v533
    %v737 = vpack.c.b16 %v541, %v534
    %v738 = vpack.c.b16 %v542, %v535
    %v739 = vpack.c.b16 %v543, %v536
    %v740 = vpack.c.b16 %v544, %v537
    %v741 = vpack.c.b16 %v552, %v545
    %v742 = vpack.c.b16 %v553, %v546
    %v743 = vpack.c.b16 %v554, %v547
    %v744 = vpack.c.b16 %v555, %v548
    %v745 = vpack.c.b16 %v556, %v549
    %v746 = vpack.c.b16 %v557, %v550
    %v747 = vpack.c.b16 %v558, %v551
    %v748 = vpack.c.b16 %v566, %v559
    %v749 = vpack.c.b16 %v567, %v560
    %v750 = vpack.c.b16 %v568, %v561
    %v751 = vpack.c.b16 %v569, %v562
    %v752 = vpack.c.b16 %v570, %v563
    %v753 = vpack.c.b16 %v571, %v564
    %v754 = vpack.c.b16 %v572, %v565
    %v755 = vpack.c.b16 %v580, %v573
    %v756 = vpack.c.b16 %v581, %v574
    %v757 = vpack.c.b16 %v582, %v575
    %v758 = vpack.c.b16 %v583, %v576
    %v759 = vpack.c.b16 %v584, %v577
    %v760 = vpack.c.b16 %v585, %v578
    %v761 = vpack.c.b16 %v586, %v579
    %v762 = vpack.c.b16 %v594, %v587
    %v763 = vpack.c.b16 %v595, %v588
    %v764 = vpack.c.b16 %v596, %v589
    %v765 = vpack.c.b16 %v597, %v590
    %v766 = vpack.c.b16 %v598, %v591
    %v767 = vpack.c.b16 %v599, %v592
    %v768 = vpack.c.b16 %v600, %v593
    %v769 = vpack.c.b16 %v608, %v601
    %v770 = vpack.c.b16 %v609, %v602
    %v771 = vpack.c.b16 %v610, %v603
    %v772 = vpack.c.b16 %v611, %v604
    %v773 = vpack.c.b16 %v612, %v605
    %v774 = vpack.c.b16 %v613, %v606
    %v775 = vpack.c.b16 %v614, %v607
    %v776 = vpack.c.b16 %v622, %v615
    %v777 = vpack.c.b16 %v623, %v616
    %v778 = vpack.c.b16 %v624, %v617
    %v779 = vpack.c.b16 %v625, %v618
    %v780 = vpack.c.b16 %v626, %v619
    %v781 = vpack.c.b16 %v627, %v620
    %v782 = vpack.c.b16 %v628, %v621
    %v783 = vpack.c.b16 %v636, %v629
    %v784 = vpack.c.b16 %v637, %v630
    %v785 = vpack.c.b16 %v638, %v631
    %v786 = vpack.c.b16 %v639, %v632
    %v787 = vpack.c.b16 %v640, %v633
    %v788 = vpack.c.b16 %v641, %v634
    %v789 = vpack.c.b16 %v642, %v635
    %v790 = vpack.c.b16 %v650, %v643
    %v791 = vpack.c.b16 %v651, %v644
    %v792 = vpack.c.b16 %v652, %v645
    %v793 = vpack.c.b16 %v653, %v646
    %v794 = vpack.c.b16 %v654, %v647
    %v795 = vpack.c.b16 %v655, %v648
    %v796 = vpack.c.b16 %v656, %v649
    %v797 = vpack.c.b16 %v664, %v657
    %v798 = vpack.c.b16 %v665, %v658
    %v799 = vpack.c.b16 %v666, %v659
    %v800 = vpack.c.b16 %v667, %v660
    %v801 = vpack.c.b16 %v668, %v661
    %v802 = vpack.c.b16 %v669, %v662
    %v803 = vpack.c.b16 %v670, %v663
    %v804 = vpack.c.b16 %v678, %v671
    %v805 = vpack.c.b16 %v679, %v672
    %v806 = vpack.c.b16 %v680, %v673
    %v807 = vpack.c.b16 %v681, %v674
    %v808 = vpack.c.b16 %v682, %v675
    %v809 = vpack.c.b16 %v683, %v676
    %v810 = vpack.c.b16 %v684, %v677
    %v811 = vpack.c.b16 %v692, %v685
    %v812 = vpack.c.b16 %v693, %v686
    %v813 = vpack.c.b16 %v694, %v687
    %v814 = vpack.c.b16 %v695, %v688
    %v815 = vpack.c.b16 %v696, %v689
    %v816 = vpack.c.b16 %v697, %v690
    %v817 = vpack.c.b16 %v698, %v691
    %v818 = vpack.c.b16 %v706, %v699
    %v819 = vpack.c.b16 %v707, %v700
    %v820 = vpack.c.b16 %v708, %v701
    %v821 = vpack.c.b16 %v709, %v702
    %v822 = vpack.c.b16 %v710, %v703
    %v823 = vpack.c.b16 %v711, %v704
    %v824 = vpack.c.b16 %v712, %v705
    %937 = vmatprep.subr.bf16.mxu0 %v714
    %938 = vmatpush1.bf16.msra.mxu0 %v713
    %939 = vmatprep.subr.bf16.mxu0 %v721
    %940 = vmatpush1.bf16.msra.mxu0 %v720
    %941 = vmatprep.subr.bf16.mxu0 %v728
    %942 = vmatpush1.bf16.msra.mxu0 %v727
    %943 = vmatprep.subr.bf16.mxu0 %v735
    %944 = vmatpush1.bf16.msra.mxu0 %v734
    %945 = vmatprep.subr.bf16.mxu0 %v742
    %946 = vmatpush1.bf16.msra.mxu0 %v741
    %947 = vmatprep.subr.bf16.mxu0 %v749
    %948 = vmatpush1.bf16.msra.mxu0 %v748
    %949 = vmatprep.subr.bf16.mxu0 %v756
    %950 = vmatpush1.bf16.msra.mxu0 %v755
    %951 = vmatprep.subr.bf16.mxu0 %v763
    %952 = vmatpush1.bf16.msra.mxu0 %v762
    %953 = vmatprep.subr.bf16.mxu0 %v770
    %954 = vmatpush1.bf16.msra.mxu0 %v769
    %955 = vmatprep.subr.bf16.mxu0 %v777
    %956 = vmatpush1.bf16.msra.mxu0 %v776
    %957 = vmatprep.subr.bf16.mxu0 %v784
    %958 = vmatpush1.bf16.msra.mxu0 %v783
    %959 = vmatprep.subr.bf16.mxu0 %v791
    %960 = vmatpush1.bf16.msra.mxu0 %v790
    %961 = vmatprep.subr.bf16.mxu0 %v798
    %962 = vmatpush1.bf16.msra.mxu0 %v797
    %963 = vmatprep.subr.bf16.mxu0 %v805
    %964 = vmatpush1.bf16.msra.mxu0 %v804
    %965 = vmatprep.subr.bf16.mxu0 %v812
    %966 = vmatpush1.bf16.msra.mxu0 %v811
    %967 = vmatprep.subr.bf16.mxu0 %v819
    %968 = vmatpush1.bf16.msra.mxu0 %v818
    %969 = vmatprep.mubr.bf16.mxu0 %v195
    %970 = vmatmul.mubr.bf16.gmra.mrb[0].mxu0 %v194
    %v971 = vpop.f32.mrb[0].mxu0
    %v972 = vadd.f32 %v329, %v971
    %v973 = vpop.f32.mrb[0].mxu0
    %v974 = vadd.f32 %v333, %v973
    %v975 = vpop.f32.mrb[0].mxu0
    %v976 = vpop.f32.mrb[0].mxu0
    %977 = vdwg.mxu0
    %978 = vmatprep.subr.bf16.mxu0 %v716
    %979 = vmatpush1.bf16.msra.mxu0 %v715
    %980 = vmatprep.subr.bf16.mxu0 %v723
    %981 = vmatpush1.bf16.msra.mxu0 %v722
    %982 = vmatprep.subr.bf16.mxu0 %v730
    %983 = vmatpush1.bf16.msra.mxu0 %v729
    %984 = vmatprep.subr.bf16.mxu0 %v737
    %985 = vmatpush1.bf16.msra.mxu0 %v736
    %986 = vmatprep.subr.bf16.mxu0 %v744
    %987 = vmatpush1.bf16.msra.mxu0 %v743
    %988 = vmatprep.subr.bf16.mxu0 %v751
    %989 = vmatpush1.bf16.msra.mxu0 %v750
    %990 = vmatprep.subr.bf16.mxu0 %v758
    %991 = vmatpush1.bf16.msra.mxu0 %v757
    %992 = vmatprep.subr.bf16.mxu0 %v765
    %993 = vmatpush1.bf16.msra.mxu0 %v764
    %994 = vmatprep.subr.bf16.mxu0 %v772
    %995 = vmatpush1.bf16.msra.mxu0 %v771
    %996 = vmatprep.subr.bf16.mxu0 %v779
    %997 = vmatpush1.bf16.msra.mxu0 %v778
    %998 = vmatprep.subr.bf16.mxu0 %v786
    %999 = vmatpush1.bf16.msra.mxu0 %v785
    %1000 = vmatprep.subr.bf16.mxu0 %v793
    %1001 = vmatpush1.bf16.msra.mxu0 %v792
    %1002 = vmatprep.subr.bf16.mxu0 %v800
    %1003 = vmatpush1.bf16.msra.mxu0 %v799
    %1004 = vmatprep.subr.bf16.mxu0 %v807
    %1005 = vmatpush1.bf16.msra.mxu0 %v806
    %1006 = vmatprep.subr.bf16.mxu0 %v814
    %1007 = vmatpush1.bf16.msra.mxu0 %v813
    %1008 = vmatprep.subr.bf16.mxu0 %v821
    %1009 = vmatpush1.bf16.msra.mxu0 %v820
    %1010 = vmatprep.mubr.bf16.mxu0 %v195
    %1011 = vmatmul.mubr.bf16.gmra.mrb[0].mxu0 %v194
    %v1012 = vpop.f32.mrb[0].mxu0
    %v1013 = vadd.f32 %v337, %v1012
    %v1014 = vpop.f32.mrb[0].mxu0
    %v1015 = vadd.f32 %v341, %v1014
    %v1016 = vpop.f32.mrb[0].mxu0
    %v1017 = vpop.f32.mrb[0].mxu0
    %1018 = vdwg.mxu0
    %1019 = vmatprep.subr.bf16.mxu0 %v718
    %1020 = vmatpush1.bf16.msra.mxu0 %v717
    %1021 = vmatprep.subr.bf16.mxu0 %v725
    %1022 = vmatpush1.bf16.msra.mxu0 %v724
    %1023 = vmatprep.subr.bf16.mxu0 %v732
    %1024 = vmatpush1.bf16.msra.mxu0 %v731
    %1025 = vmatprep.subr.bf16.mxu0 %v739
    %1026 = vmatpush1.bf16.msra.mxu0 %v738
    %1027 = vmatprep.subr.bf16.mxu0 %v746
    %1028 = vmatpush1.bf16.msra.mxu0 %v745
    %1029 = vmatprep.subr.bf16.mxu0 %v753
    %1030 = vmatpush1.bf16.msra.mxu0 %v752
    %1031 = vmatprep.subr.bf16.mxu0 %v760
    %1032 = vmatpush1.bf16.msra.mxu0 %v759
    %1033 = vmatprep.subr.bf16.mxu0 %v767
    %1034 = vmatpush1.bf16.msra.mxu0 %v766
    %1035 = vmatprep.subr.bf16.mxu0 %v774
    %1036 = vmatpush1.bf16.msra.mxu0 %v773
    %1037 = vmatprep.subr.bf16.mxu0 %v781
    %1038 = vmatpush1.bf16.msra.mxu0 %v780
    %1039 = vmatprep.subr.bf16.mxu0 %v788
    %1040 = vmatpush1.bf16.msra.mxu0 %v787
    %1041 = vmatprep.subr.bf16.mxu0 %v795
    %1042 = vmatpush1.bf16.msra.mxu0 %v794
    %1043 = vmatprep.subr.bf16.mxu0 %v802
    %1044 = vmatpush1.bf16.msra.mxu0 %v801
    %1045 = vmatprep.subr.bf16.mxu0 %v809
    %1046 = vmatpush1.bf16.msra.mxu0 %v808
    %1047 = vmatprep.subr.bf16.mxu0 %v816
    %1048 = vmatpush1.bf16.msra.mxu0 %v815
    %1049 = vmatprep.subr.bf16.mxu0 %v823
    %1050 = vmatpush1.bf16.msra.mxu0 %v822
    %1051 = vmatprep.mubr.bf16.mxu0 %v195
    %1052 = vmatmul.mubr.bf16.gmra.mrb[0].mxu0 %v194
    %v1053 = vpop.f32.mrb[0].mxu0
    %v1054 = vadd.f32 %v345, %v1053
    %v1055 = vpop.f32.mrb[0].mxu0
    %v1056 = vadd.f32 %v349, %v1055
    %v1057 = vpop.f32.mrb[0].mxu0
    %v1058 = vpop.f32.mrb[0].mxu0
    %1059 = vdwg.mxu0
    %1060 = vmatprep.subr.bf16.mxu0 0
    %1061 = vmatpush1.bf16.msra.mxu0 %v719
    %1062 = vmatprep.subr.bf16.mxu0 0
    %1063 = vmatpush1.bf16.msra.mxu0 %v726
    %1064 = vmatprep.subr.bf16.mxu0 0
    %1065 = vmatpush1.bf16.msra.mxu0 %v733
    %1066 = vmatprep.subr.bf16.mxu0 0
    %1067 = vmatpush1.bf16.msra.mxu0 %v740
    %1068 = vmatprep.subr.bf16.mxu0 0
    %1069 = vmatpush1.bf16.msra.mxu0 %v747
    %1070 = vmatprep.subr.bf16.mxu0 0
    %1071 = vmatpush1.bf16.msra.mxu0 %v754
    %1072 = vmatprep.subr.bf16.mxu0 0
    %1073 = vmatpush1.bf16.msra.mxu0 %v761
    %1074 = vmatprep.subr.bf16.mxu0 0
    %1075 = vmatpush1.bf16.msra.mxu0 %v768
    %1076 = vmatprep.subr.bf16.mxu0 0
    %1077 = vmatpush1.bf16.msra.mxu0 %v775
    %1078 = vmatprep.subr.bf16.mxu0 0
    %1079 = vmatpush1.bf16.msra.mxu0 %v782
    %1080 = vmatprep.subr.bf16.mxu0 0
    %1081 = vmatpush1.bf16.msra.mxu0 %v789
    %1082 = vmatprep.subr.bf16.mxu0 0
    %1083 = vmatpush1.bf16.msra.mxu0 %v796
    %1084 = vmatprep.subr.bf16.mxu0 0
    %1085 = vmatpush1.bf16.msra.mxu0 %v803
    %1086 = vmatprep.subr.bf16.mxu0 0
    %1087 = vmatpush1.bf16.msra.mxu0 %v810
    %1088 = vmatprep.subr.bf16.mxu0 0
    %1089 = vmatpush1.bf16.msra.mxu0 %v817
    %1090 = vmatprep.subr.bf16.mxu0 0
    %1091 = vmatpush1.bf16.msra.mxu0 %v824
    %1092 = vmatprep.mubr.bf16.mxu0 %v195
    %1093 = vmatmul.mubr.bf16.gmra.mrb[0].mxu0 %v194
    %v1094 = vpop.f32.mrb[0].mxu0
    %v1095 = vadd.f32 %v353, %v1094
    %v1096 = vpop.f32.mrb[0].mxu0
    %v1097 = vpop.f32.mrb[0].mxu0
    %v1098 = vpop.f32.mrb[0].mxu0
    %1099 = vdwg.mxu0
    %v1100 = vtanh.pop %v972
    %v1101 = vtanh.pop %v974
    %v1102 = vtanh.pop %v1013
    %v1103 = vtanh.pop %v1015
    %v1104 = vtanh.pop %v1054
    %v1105 = vtanh.pop %v1056
    %v1106 = vtanh.pop %v1095
    %v1107 = vpack.c.bf16 %v1100, %v1100
    %v1108 = vpack.c.bf16 %v1101, %v1101
    %v1109 = vpack.c.bf16 %v1102, %v1102
    %v1110 = vpack.c.bf16 %v1103, %v1103
    %v1111 = vpack.c.bf16 %v1104, %v1104
    %v1112 = vpack.c.bf16 %v1105, %v1105
    %v1113 = vpack.c.bf16 %v1106, %v1106
    %v1121 = vunpack.c.l.b16 %v1107
    %v1122 = vunpack.c.l.b16 %v1108
    %v1123 = vunpack.c.l.b16 %v1109
    %v1124 = vunpack.c.l.b16 %v1110
    %v1125 = vunpack.c.l.b16 %v1111
    %v1126 = vunpack.c.l.b16 %v1112
    %v1127 = vunpack.c.l.b16 %v1113
    %v1128 = vpack.c.b16 %v1122, %v1121
    %v1129 = vpack.c.b16 %v1124, %v1123
    %v1130 = vpack.c.b16 %v1126, %v1125
    %v1131 = vpack.c.b16 %v1127, %v1127
    %1136 = vst [vmem:[#allocation2] sm:$0xff] %v1128
    %1137 = vst [vmem:[#allocation2 + $0x8] sm:$0xff] %v1129
    %1138 = vst [vmem:[#allocation2 + $0x10] sm:$0xff] %v1130
    %vm1139 = vcmask 125952
    %1140 = vst.msk [vmem:[#allocation2 + $0x18] sm:$0xf] %vm1139, %v1131
    // Predicated region
    $region22: #{tpu_custom_call.1} parent=1 // pred_check
      _
    $region23: #{tpu_custom_call.1} parent=1 // pred_check_branch
      %1142 = sbr.rel (0) target = $region25
    $region24: #{tpu_custom_call.1} parent=1 // pred_region
      %s1144 = ssub.s32 448, 448
      %1145 = vsyncadd [#allocation3], %s1144
      %s1147 = sshll.u32 [#allocation2], 4
      %s1148 = int_to_ptr.vmem [resolvable:$true] %s1147
      %1150 = dma.vmem_to_hbm [thread:$0]  %s1148, 448, %s5, [#allocation3]
    $region25: #{tpu_custom_call.1} parent=1 // pred_fallthru
      _
    // Predicated region
    $region26: #{tpu_custom_call.1} parent=1 // pred_check
      _
    $region27: #{tpu_custom_call.1} parent=1 // pred_check_branch
      %1152 = sbr.rel (0) target = $region29
    $region28: #{tpu_custom_call.1} parent=1 // pred_region
      %1153 = dma.done [#allocation3], 448
    $region29: #{tpu_custom_call.1} parent=1 // pred_fallthru
      _
    %1154 = vsyncpa [#allocation3], 1

</llo_original>
